<compile_context>
chip_gen: v6e
topology: v6e:2x2x1
jax: 0.10.0
libtpu: 0.0.40
codegen_flags: <defaults>
</compile_context>

<pallas_src>
import functools

import jax
import jax.numpy as jnp
from jax.experimental import pallas as pl
from jax.experimental.pallas import tpu as pltpu

INPUT_DIM = 33
HIDDEN_DIM = 128
OUTPUT_DIM = 64


def _round_up(n, m):
    return pl.cdiv(n, m) * m


def movie_tower_kernel(x_ref, w1_ref, b1_ref, w2_ref, b2_ref, w3_ref, b3_ref,
                       o_ref):
    # One whole-tile pass per grid step: each weight is pushed into the MXU
    # exactly once per tile; h1/h2 intermediates live in VMEM and Mosaic tiles
    # the M dimension internally. All matmuls accumulate in f32.
    x = x_ref[...]
    h = jnp.dot(x, w1_ref[...], preferred_element_type=jnp.float32)
    h = jnp.maximum(h + b1_ref[...], 0.0)
    h = jnp.dot(h.astype(w2_ref.dtype), w2_ref[...],
                preferred_element_type=jnp.float32)
    h = jnp.maximum(h + b2_ref[...], 0.0)
    h = jnp.dot(h.astype(w3_ref.dtype), w3_ref[...],
                preferred_element_type=jnp.float32)
    h = jnp.maximum(h + b3_ref[...], 0.0)
    o_ref[...] = h.astype(o_ref.dtype)


@functools.partial(jax.jit,
                   static_argnames=("tile_b", "compute_dtype", "out_dtype"))
def movie_tower_forward(x, w1, b1, w2, b2, w3, b3, *,
                        tile_b=4096, compute_dtype=jnp.bfloat16,
                        out_dtype=None):
    B, in_dim = x.shape
    out_dim = w3.shape[1]
    if out_dtype is None:
        out_dtype = x.dtype  # captured BEFORE any compute-dtype cast

    # Cast all operands to a single compute dtype in the wrapper so jnp.dot
    # never silently promotes to a slow mixed/f32 MXU path.
    if compute_dtype is not None:
        x = x.astype(compute_dtype)
        w1, b1, w2, b2, w3, b3 = (p.astype(compute_dtype)
                                  for p in (w1, b1, w2, b2, w3, b3))

    # Sub-32-bit dtypes pack 16 rows per vreg -> 16-row batch granule; f32 -> 8.
    granule = 8 if jnp.dtype(x.dtype).itemsize >= 4 else 16

    b_pad = _round_up(B, granule)
    tile_b = _round_up(min(tile_b, b_pad), granule)
    # v7x has 2 TensorCores: "parallel" only shards the grid axis across them
    # if there are >= 2 grid steps, so cap the tile at half the padded batch.
    if b_pad >= 2 * granule:
        tile_b = min(tile_b, _round_up(pl.cdiv(b_pad, 2), granule))

    B_pad = _round_up(B, tile_b)
    if B_pad != B:
        # Rows are independent; padded rows compute ReLU(bias) garbage that is
        # sliced off before returning.
        x = jnp.pad(x, ((0, B_pad - B), (0, 0)))
    grid = (B_pad // tile_b,)

    # Weights / biases are tiny -> whole tensors as one block, constant across
    # the batch grid axis (fetched once). Last dims of all blocks equal the
    # full array dims (33 / 64 / 128), so no HBM lane padding is introduced.
    in_specs = [
        pl.BlockSpec((tile_b, in_dim), lambda i: (i, 0)),   # x (batch-tiled)
        pl.BlockSpec(w1.shape, lambda i: (0, 0)),           # w1
        pl.BlockSpec(b1.shape, lambda i: (0, 0)),           # b1
        pl.BlockSpec(w2.shape, lambda i: (0, 0)),           # w2
        pl.BlockSpec(b2.shape, lambda i: (0, 0)),           # b2
        pl.BlockSpec(w3.shape, lambda i: (0, 0)),           # w3
        pl.BlockSpec(b3.shape, lambda i: (0, 0)),           # b3
    ]
    out_spec = pl.BlockSpec((tile_b, out_dim), lambda i: (i, 0))

    # Advisory cost model: 3 GEMMs; traffic = x + params + output.
    flops = 2 * B_pad * (w1.shape[0] * w1.shape[1]
                         + w2.shape[0] * w2.shape[1]
                         + w3.shape[0] * w3.shape[1])
    param_bytes = sum(int(p.size) * p.dtype.itemsize
                      for p in (w1, b1, w2, b2, w3, b3))
    bytes_accessed = (int(x.size) * x.dtype.itemsize
                      + B_pad * out_dim * jnp.dtype(out_dtype).itemsize
                      + param_bytes)

    out = pl.pallas_call(
        movie_tower_kernel,
        out_shape=jax.ShapeDtypeStruct((B_pad, out_dim), out_dtype),
        grid_spec=pltpu.PrefetchScalarGridSpec(
            num_scalar_prefetch=0,
            grid=grid,
            in_specs=in_specs,
            out_specs=out_spec,
        ),
        compiler_params=pltpu.CompilerParams(
            dimension_semantics=("parallel",),
            vmem_limit_bytes=48 * 1024 * 1024),
        cost_estimate=pl.CostEstimate(
            flops=int(flops), transcendentals=0,
            bytes_accessed=int(bytes_accessed)),
    )(x, w1, b1, w2, b2, w3, b3)

    return out[:B] if B_pad != B else out


def xavier_uniform(key, fan_in, fan_out, dtype=jnp.float32):
    # Matches nn.init.xavier_uniform_: U(-a, a), a = sqrt(6 / (fan_in+fan_out))
    bound = (6.0 / (fan_in + fan_out)) ** 0.5
    # Stored as (in, out) so the kernel can do x @ W directly.
    return jax.random.uniform(key, (fan_in, fan_out), dtype, -bound, bound)


def linear_bias(key, fan_in, fan_out, dtype=jnp.float32):
    # PyTorch nn.Linear default bias init: U(-1/sqrt(fan_in), 1/sqrt(fan_in))
    bound = 1.0 / (fan_in ** 0.5)
    return jax.random.uniform(key, (1, fan_out), dtype, -bound, bound)


def init_params(key):
    k1, k2, k3, k4, k5, k6 = jax.random.split(key, 6)
    w1 = xavier_uniform(k1, INPUT_DIM, HIDDEN_DIM)
    b1 = linear_bias(k2, INPUT_DIM, HIDDEN_DIM)
    w2 = xavier_uniform(k3, HIDDEN_DIM, HIDDEN_DIM)
    b2 = linear_bias(k4, HIDDEN_DIM, HIDDEN_DIM)
    w3 = xavier_uniform(k5, HIDDEN_DIM, OUTPUT_DIM)
    b3 = linear_bias(k6, HIDDEN_DIM, OUTPUT_DIM)
    return w1, b1, w2, b2, w3, b3


def reference_forward(x, w1, b1, w2, b2, w3, b3):
    h = jnp.maximum(x @ w1 + b1, 0.0)
    h = jnp.maximum(h @ w2 + b2, 0.0)
    return jnp.maximum(h @ w3 + b3, 0.0)


if __name__ == "__main__":
    key = jax.random.PRNGKey(0)
    kx, kp = jax.random.split(key)

    # Small, deliberately ragged batch (not a multiple of 8/16) to exercise
    # the wrapper-side padding + multi-grid-step path.
    batch = 20
    x = jax.random.normal(kx, (batch, INPUT_DIM), jnp.float32)
    params = init_params(kp)

    ref = reference_forward(x, *params)

    # 1) Default path: bf16 compute (single-pass MXU), f32 output, grid >= 2.
    out = jax.block_until_ready(movie_tower_forward(x, *params))
    assert out.shape == (batch, OUTPUT_DIM)
    assert out.dtype == x.dtype
    assert jnp.allclose(out, ref, atol=5e-2, rtol=5e-2)

    # 2) Strict-accuracy f32 compute path, small explicit tile (multi-step grid).
    out_f32 = jax.block_until_ready(
        movie_tower_forward(x, *params, tile_b=8, compute_dtype=jnp.float32))
    assert out_f32.shape == (batch, OUTPUT_DIM)
    assert jnp.allclose(out_f32, ref, atol=1e-5, rtol=1e-5)

    # 3) bf16 in / bf16 out (halves HBM writeback; v5e-friendly).
    x_bf = x.astype(jnp.bfloat16)
    params_bf = tuple(p.astype(jnp.bfloat16) for p in params)
    out_bf = jax.block_until_ready(movie_tower_forward(x_bf, *params_bf))
    assert out_bf.shape == (batch, OUTPUT_DIM)
    assert out_bf.dtype == jnp.bfloat16
    assert jnp.allclose(out_bf.astype(jnp.float32), ref, atol=1e-1, rtol=1e-1)

    print("KERNEL_OK")
</pallas_src>

<mosaic_0001>
module attributes {stable_mosaic.version = 11 : i64} {
  func.func @movie_tower_kernel(%arg0: i32, %arg1: memref<16x33xbf16, #tpu.memory_space<vmem>>, %arg2: memref<33x128xbf16, #tpu.memory_space<vmem>>, %arg3: memref<1x128xbf16, #tpu.memory_space<vmem>>, %arg4: memref<128x128xbf16, #tpu.memory_space<vmem>>, %arg5: memref<1x128xbf16, #tpu.memory_space<vmem>>, %arg6: memref<128x64xbf16, #tpu.memory_space<vmem>>, %arg7: memref<1x64xbf16, #tpu.memory_space<vmem>>, %arg8: memref<16x64xf32, #tpu.memory_space<vmem>>) attributes {dimension_semantics = [#tpu.dimension_semantics<parallel>], iteration_bounds = array<i64: 2>, scalar_prefetch = 0 : i64, scratch_operands = 0 : i64, tpu.core_type = #tpu.core_type<tc>, window_params = [{transform_indices = @transform_0, window_bounds = array<i64: 16, 33>}, {pipeline_mode = #tpu.pipeline_mode<synchronous>, transform_indices = @transform_1, window_bounds = array<i64: 33, 128>}, {pipeline_mode = #tpu.pipeline_mode<synchronous>, transform_indices = @transform_2, window_bounds = array<i64: 1, 128>}, {pipeline_mode = #tpu.pipeline_mode<synchronous>, transform_indices = @transform_3, window_bounds = array<i64: 128, 128>}, {pipeline_mode = #tpu.pipeline_mode<synchronous>, transform_indices = @transform_4, window_bounds = array<i64: 1, 128>}, {pipeline_mode = #tpu.pipeline_mode<synchronous>, transform_indices = @transform_5, window_bounds = array<i64: 128, 64>}, {pipeline_mode = #tpu.pipeline_mode<synchronous>, transform_indices = @transform_6, window_bounds = array<i64: 1, 64>}, {transform_indices = @transform_7, window_bounds = array<i64: 16, 64>}]} {
    %c0 = arith.constant 0 : index
    %c0_0 = arith.constant 0 : index
    %0 = vector.load %arg1[%c0, %c0_0] : memref<16x33xbf16, #tpu.memory_space<vmem>>, vector<16x33xbf16>
    %c0_1 = arith.constant 0 : index
    %c0_2 = arith.constant 0 : index
    %1 = vector.load %arg2[%c0_1, %c0_2] : memref<33x128xbf16, #tpu.memory_space<vmem>>, vector<33x128xbf16>
    %cst = arith.constant dense<0.000000e+00> : vector<16x128xf32>
    %2 = tpu.matmul %0, %1, %cst {dimension_numbers = #tpu.dot_dimension_numbers<[1], [0], [0], [1], [0, 0, 1, 1], [], []>} : vector<16x33xbf16>, vector<33x128xbf16>, vector<16x128xf32> -> vector<16x128xf32>
    %c0_3 = arith.constant 0 : index
    %c0_4 = arith.constant 0 : index
    %3 = vector.load %arg3[%c0_3, %c0_4] : memref<1x128xbf16, #tpu.memory_space<vmem>>, vector<1x128xbf16>
    %4 = arith.extf %3 : vector<1x128xbf16> to vector<1x128xf32>
    %5 = vector.broadcast %4 : vector<1x128xf32> to vector<16x128xf32>
    %6 = arith.addf %2, %5 : vector<16x128xf32>
    %cst_5 = arith.constant 0.000000e+00 : f32
    %7 = vector.broadcast %cst_5 : f32 to vector<16x128xf32>
    %8 = arith.maximumf %6, %7 : vector<16x128xf32>
    %9 = arith.truncf %8 : vector<16x128xf32> to vector<16x128xbf16>
    %c0_6 = arith.constant 0 : index
    %c0_7 = arith.constant 0 : index
    %10 = vector.load %arg4[%c0_6, %c0_7] : memref<128x128xbf16, #tpu.memory_space<vmem>>, vector<128x128xbf16>
    %cst_8 = arith.constant dense<0.000000e+00> : vector<16x128xf32>
    %11 = tpu.matmul %9, %10, %cst_8 {dimension_numbers = #tpu.dot_dimension_numbers<[1], [0], [0], [1], [0, 0, 1, 1], [], []>} : vector<16x128xbf16>, vector<128x128xbf16>, vector<16x128xf32> -> vector<16x128xf32>
    %c0_9 = arith.constant 0 : index
    %c0_10 = arith.constant 0 : index
    %12 = vector.load %arg5[%c0_9, %c0_10] : memref<1x128xbf16, #tpu.memory_space<vmem>>, vector<1x128xbf16>
    %13 = arith.extf %12 : vector<1x128xbf16> to vector<1x128xf32>
    %14 = vector.broadcast %13 : vector<1x128xf32> to vector<16x128xf32>
    %15 = arith.addf %11, %14 : vector<16x128xf32>
    %cst_11 = arith.constant 0.000000e+00 : f32
    %16 = vector.broadcast %cst_11 : f32 to vector<16x128xf32>
    %17 = arith.maximumf %15, %16 : vector<16x128xf32>
    %18 = arith.truncf %17 : vector<16x128xf32> to vector<16x128xbf16>
    %c0_12 = arith.constant 0 : index
    %c0_13 = arith.constant 0 : index
    %19 = vector.load %arg6[%c0_12, %c0_13] : memref<128x64xbf16, #tpu.memory_space<vmem>>, vector<128x64xbf16>
    %cst_14 = arith.constant dense<0.000000e+00> : vector<16x64xf32>
    %20 = tpu.matmul %18, %19, %cst_14 {dimension_numbers = #tpu.dot_dimension_numbers<[1], [0], [0], [1], [0, 0, 1, 1], [], []>} : vector<16x128xbf16>, vector<128x64xbf16>, vector<16x64xf32> -> vector<16x64xf32>
    %c0_15 = arith.constant 0 : index
    %c0_16 = arith.constant 0 : index
    %21 = vector.load %arg7[%c0_15, %c0_16] : memref<1x64xbf16, #tpu.memory_space<vmem>>, vector<1x64xbf16>
    %22 = arith.extf %21 : vector<1x64xbf16> to vector<1x64xf32>
    %23 = vector.broadcast %22 : vector<1x64xf32> to vector<16x64xf32>
    %24 = arith.addf %20, %23 : vector<16x64xf32>
    %cst_17 = arith.constant 0.000000e+00 : f32
    %25 = vector.broadcast %cst_17 : f32 to vector<16x64xf32>
    %26 = arith.maximumf %24, %25 : vector<16x64xf32>
    %c0_18 = arith.constant 0 : index
    %c0_19 = arith.constant 0 : index
    %27 = vector.load %arg8[%c0_18, %c0_19] : memref<16x64xf32, #tpu.memory_space<vmem>>, vector<16x64xf32>
    tpu.vector_store %arg8[%c0_18, %c0_19], %26 {strides = array<i32>} : memref<16x64xf32, #tpu.memory_space<vmem>>, vector<16x64xf32>,
    return
  }
  func.func @transform_0(%arg0: i32) -> (i32, i32) {
    %c0_i32 = arith.constant 0 : i32
    %c0_i32_0 = arith.constant 0 : i32
    return %arg0, %c0_i32 : i32, i32
  }
  func.func @transform_1(%arg0: i32) -> (i32, i32) {
    %c0_i32 = arith.constant 0 : i32
    %c0_i32_0 = arith.constant 0 : i32
    %c0_i32_1 = arith.constant 0 : i32
    return %c0_i32, %c0_i32_0 : i32, i32
  }
  func.func @transform_2(%arg0: i32) -> (i32, i32) {
    %c0_i32 = arith.constant 0 : i32
    %c0_i32_0 = arith.constant 0 : i32
    %c0_i32_1 = arith.constant 0 : i32
    return %c0_i32, %c0_i32_0 : i32, i32
  }
  func.func @transform_3(%arg0: i32) -> (i32, i32) {
    %c0_i32 = arith.constant 0 : i32
    %c0_i32_0 = arith.constant 0 : i32
    %c0_i32_1 = arith.constant 0 : i32
    return %c0_i32, %c0_i32_0 : i32, i32
  }
  func.func @transform_4(%arg0: i32) -> (i32, i32) {
    %c0_i32 = arith.constant 0 : i32
    %c0_i32_0 = arith.constant 0 : i32
    %c0_i32_1 = arith.constant 0 : i32
    return %c0_i32, %c0_i32_0 : i32, i32
  }
  func.func @transform_5(%arg0: i32) -> (i32, i32) {
    %c0_i32 = arith.constant 0 : i32
    %c0_i32_0 = arith.constant 0 : i32
    %c0_i32_1 = arith.constant 0 : i32
    return %c0_i32, %c0_i32_0 : i32, i32
  }
  func.func @transform_6(%arg0: i32) -> (i32, i32) {
    %c0_i32 = arith.constant 0 : i32
    %c0_i32_0 = arith.constant 0 : i32
    %c0_i32_1 = arith.constant 0 : i32
    return %c0_i32, %c0_i32_0 : i32, i32
  }
  func.func @transform_7(%arg0: i32) -> (i32, i32) {
    %c0_i32 = arith.constant 0 : i32
    %c0_i32_0 = arith.constant 0 : i32
    return %arg0, %c0_i32 : i32, i32
  }
}

</mosaic_0001>

<llo_original>
// kernel: movie_tower_forward.1
$region0: #{movie_tower_forward.1}
  #allocation0 [shape = 'u32[]', space=smem, size = 0x4, offset = 0x4, fixed_abs, tag = 'smem constant byte address 0x4 - core index']
  #allocation1 [shape = 'u32[144,128]{1,0:T(1,128)}', space=vmem, size = 0x12000, scoped, tag = 'internal scratch']
  %s0 = inlined_call_operand.vmem [shape: bf16[32,33], index: 0, kind: input, shape index: {}]
  %s1 = inlined_call_operand.vmem [shape: bf16[33,128], index: 1, kind: input, shape index: {}]
  %s2 = inlined_call_operand.vmem [shape: bf16[1,128], index: 2, kind: input, shape index: {}]
  %s3 = inlined_call_operand.vmem [shape: bf16[128,128], index: 3, kind: input, shape index: {}]
  %s4 = inlined_call_operand.vmem [shape: bf16[1,128], index: 4, kind: input, shape index: {}]
  %s5 = inlined_call_operand.vmem [shape: bf16[128,64], index: 5, kind: input, shape index: {}]
  %s6 = inlined_call_operand.vmem [shape: bf16[1,64], index: 6, kind: input, shape index: {}]
  %s7 = inlined_call_operand.vmem [shape: f32[32,64], index: 7, kind: output, shape index: {}]
  %s8 = sld [smem:[#allocation0]]
  $region61: #{movie_tower_forward.1} parent=0
    _
  %s10 = ssub.s32 1, %s8
  %s11 = scalar_select 0, %s10, %s8
  loop: start=0, step=1, limit=4
  $region2: #{movie_tower_forward.1} parent=0 // loop_pre_header
    _
  $region3: #{movie_tower_forward.1} parent=0 // loop_header
    %s13 = sphi 0, %s17
    %p14 = scmp.ge.s32.totalorder %s13, 4
    %s23 = sphi 0, %s25
    %s26 = sphi 0, %s23
    %s27 = sphi 0, %s26
    %s43 = sphi 0, %s27
    %s47 = sphi 0, %s47
    %s49 = sphi 0, %s47
    %s50 = sphi 0, %s49
    %s64 = sphi 0, %s50
    %s68 = sphi 0, %s68
    %s70 = sphi 0, %s68
    %s71 = sphi 0, %s70
    %s85 = sphi 0, %s71
    %s89 = sphi 0, %s89
    %s91 = sphi 0, %s89
    %s92 = sphi 0, %s91
    %s106 = sphi 0, %s92
    %s110 = sphi 0, %s110
    %s112 = sphi 0, %s110
    %s113 = sphi 0, %s112
    %s127 = sphi 0, %s113
    %s131 = sphi 0, %s131
    %s133 = sphi 0, %s131
    %s134 = sphi 0, %s133
    %s148 = sphi 0, %s134
    %s152 = sphi 0, %s152
    %s154 = sphi 0, %s152
    %s155 = sphi 0, %s154
    %s169 = sphi 0, %s155
    %s175 = sphi 0, %s177
    %s178 = sphi 0, %s175
    %s179 = sphi 0, %s178
    %s195 = sphi 0, %s179
  $region4: #{movie_tower_forward.1} parent=0 // loop_header_branch
    %16 = sbr.rel (%p14) target = $region8
  $region5: #{movie_tower_forward.1} parent=0 // loop_body
    %s18 = ssub.s32 %s13, 1
    %s19 = ssub.s32 %s13, 2
    %s20 = sadd.s32 %s13, 1
    %s21 = ssub.s32 %s13, %s20
    %p22 = scmp.eq.s32.totalorder %s21, 0
    %s24 = sadd.s32 %s23, 1
    %s25 = scalar_select %p22, %s23, %s24
    %p28 = pneg %p22
    %p29 = scmp.eq.s32.totalorder %s13, 1
    %p30 = por %p28, %p29
    %p31 = scmp.ne.s32.totalorder %s23, %s26
    %p32 = scmp.eq.s32.totalorder %s13, 0
    %p33 = por %p31, %p32
    %p34 = scmp.ne.s32.totalorder %s23, %s26
    %p35 = scmp.eq.s32.totalorder %s18, 1
    %p36 = por %p34, %p35
    %p37 = scmp.ne.s32.totalorder %s26, %s27
    %p38 = scmp.eq.s32.totalorder %s18, 0
    %p39 = por %p37, %p38
    %p40 = scmp.ne.s32.totalorder %s26, %s27
    %p41 = scmp.eq.s32.totalorder %s19, 1
    %p42 = por %p40, %p41
    %p44 = scmp.ne.s32.totalorder %s27, %s43
    %p45 = scmp.eq.s32.totalorder %s19, 0
    %p46 = por %p44, %p45
    %s48 = sadd.s32 %s47, 1
    %p51 = scmp.eq.s32.totalorder %s13, 1
    %p52 = scmp.ne.s32.totalorder %s47, %s49
    %p53 = scmp.eq.s32.totalorder %s13, 0
    %p54 = por %p52, %p53
    %p55 = scmp.ne.s32.totalorder %s47, %s49
    %p56 = scmp.eq.s32.totalorder %s18, 1
    %p57 = por %p55, %p56
    %p58 = scmp.ne.s32.totalorder %s49, %s50
    %p59 = scmp.eq.s32.totalorder %s18, 0
    %p60 = por %p58, %p59
    %p61 = scmp.ne.s32.totalorder %s49, %s50
    %p62 = scmp.eq.s32.totalorder %s19, 1
    %p63 = por %p61, %p62
    %p65 = scmp.ne.s32.totalorder %s50, %s64
    %p66 = scmp.eq.s32.totalorder %s19, 0
    %p67 = por %p65, %p66
    %s69 = sadd.s32 %s68, 1
    %p72 = scmp.eq.s32.totalorder %s13, 1
    %p73 = scmp.ne.s32.totalorder %s68, %s70
    %p74 = scmp.eq.s32.totalorder %s13, 0
    %p75 = por %p73, %p74
    %p76 = scmp.ne.s32.totalorder %s68, %s70
    %p77 = scmp.eq.s32.totalorder %s18, 1
    %p78 = por %p76, %p77
    %p79 = scmp.ne.s32.totalorder %s70, %s71
    %p80 = scmp.eq.s32.totalorder %s18, 0
    %p81 = por %p79, %p80
    %p82 = scmp.ne.s32.totalorder %s70, %s71
    %p83 = scmp.eq.s32.totalorder %s19, 1
    %p84 = por %p82, %p83
    %p86 = scmp.ne.s32.totalorder %s71, %s85
    %p87 = scmp.eq.s32.totalorder %s19, 0
    %p88 = por %p86, %p87
    %s90 = sadd.s32 %s89, 1
    %p93 = scmp.eq.s32.totalorder %s13, 1
    %p94 = scmp.ne.s32.totalorder %s89, %s91
    %p95 = scmp.eq.s32.totalorder %s13, 0
    %p96 = por %p94, %p95
    %p97 = scmp.ne.s32.totalorder %s89, %s91
    %p98 = scmp.eq.s32.totalorder %s18, 1
    %p99 = por %p97, %p98
    %p100 = scmp.ne.s32.totalorder %s91, %s92
    %p101 = scmp.eq.s32.totalorder %s18, 0
    %p102 = por %p100, %p101
    %p103 = scmp.ne.s32.totalorder %s91, %s92
    %p104 = scmp.eq.s32.totalorder %s19, 1
    %p105 = por %p103, %p104
    %p107 = scmp.ne.s32.totalorder %s92, %s106
    %p108 = scmp.eq.s32.totalorder %s19, 0
    %p109 = por %p107, %p108
    %s111 = sadd.s32 %s110, 1
    %p114 = scmp.eq.s32.totalorder %s13, 1
    %p115 = scmp.ne.s32.totalorder %s110, %s112
    %p116 = scmp.eq.s32.totalorder %s13, 0
    %p117 = por %p115, %p116
    %p118 = scmp.ne.s32.totalorder %s110, %s112
    %p119 = scmp.eq.s32.totalorder %s18, 1
    %p120 = por %p118, %p119
    %p121 = scmp.ne.s32.totalorder %s112, %s113
    %p122 = scmp.eq.s32.totalorder %s18, 0
    %p123 = por %p121, %p122
    %p124 = scmp.ne.s32.totalorder %s112, %s113
    %p125 = scmp.eq.s32.totalorder %s19, 1
    %p126 = por %p124, %p125
    %p128 = scmp.ne.s32.totalorder %s113, %s127
    %p129 = scmp.eq.s32.totalorder %s19, 0
    %p130 = por %p128, %p129
    %s132 = sadd.s32 %s131, 1
    %p135 = scmp.eq.s32.totalorder %s13, 1
    %p136 = scmp.ne.s32.totalorder %s131, %s133
    %p137 = scmp.eq.s32.totalorder %s13, 0
    %p138 = por %p136, %p137
    %p139 = scmp.ne.s32.totalorder %s131, %s133
    %p140 = scmp.eq.s32.totalorder %s18, 1
    %p141 = por %p139, %p140
    %p142 = scmp.ne.s32.totalorder %s133, %s134
    %p143 = scmp.eq.s32.totalorder %s18, 0
    %p144 = por %p142, %p143
    %p145 = scmp.ne.s32.totalorder %s133, %s134
    %p146 = scmp.eq.s32.totalorder %s19, 1
    %p147 = por %p145, %p146
    %p149 = scmp.ne.s32.totalorder %s134, %s148
    %p150 = scmp.eq.s32.totalorder %s19, 0
    %p151 = por %p149, %p150
    %s153 = sadd.s32 %s152, 1
    %p156 = scmp.eq.s32.totalorder %s13, 1
    %p157 = scmp.ne.s32.totalorder %s152, %s154
    %p158 = scmp.eq.s32.totalorder %s13, 0
    %p159 = por %p157, %p158
    %p160 = scmp.ne.s32.totalorder %s152, %s154
    %p161 = scmp.eq.s32.totalorder %s18, 1
    %p162 = por %p160, %p161
    %p163 = scmp.ne.s32.totalorder %s154, %s155
    %p164 = scmp.eq.s32.totalorder %s18, 0
    %p165 = por %p163, %p164
    %p166 = scmp.ne.s32.totalorder %s154, %s155
    %p167 = scmp.eq.s32.totalorder %s19, 1
    %p168 = por %p166, %p167
    %p170 = scmp.ne.s32.totalorder %s155, %s169
    %p171 = scmp.eq.s32.totalorder %s19, 0
    %p172 = por %p170, %p171
    %s173 = ssub.s32 %s13, %s20
    %p174 = scmp.eq.s32.totalorder %s173, 0
    %s176 = sadd.s32 %s175, 1
    %s177 = scalar_select %p174, %s175, %s176
    %p180 = pneg %p174
    %p181 = scmp.eq.s32.totalorder %s13, 1
    %p182 = por %p180, %p181
    %p183 = scmp.ne.s32.totalorder %s175, %s178
    %p184 = scmp.eq.s32.totalorder %s13, 0
    %p185 = por %p183, %p184
    %p186 = scmp.ne.s32.totalorder %s175, %s178
    %p187 = scmp.eq.s32.totalorder %s18, 1
    %p188 = por %p186, %p187
    %p189 = scmp.ne.s32.totalorder %s178, %s179
    %p190 = scmp.eq.s32.totalorder %s18, 0
    %p191 = por %p189, %p190
    %p192 = scmp.ne.s32.totalorder %s178, %s179
    %p193 = scmp.eq.s32.totalorder %s19, 1
    %p194 = por %p192, %p193
    %p196 = scmp.ne.s32.totalorder %s179, %s195
    %p197 = scmp.eq.s32.totalorder %s19, 0
    %p198 = por %p196, %p197
    %p199 = scmp.le.s32.totalorder 1, %s13
    %p200 = scmp.lt.s32.totalorder %s13, 3
    %p201 = pnand %p199, %p200
    %p202 = pneg %p201
    // Predicated region
    $region9: #{movie_tower_forward.1} parent=5 // pred_check
      _
    $region10: #{movie_tower_forward.1} parent=5 // pred_check_branch
      %204 = sbr.rel (%p201) target = $region12
    $region11: #{movie_tower_forward.1} parent=5 // pred_region
      %s205 = ssub.s32 %s13, 1
      // Predicated region
      $region13: #{movie_tower_forward.1} parent=11 // pred_check
        %p206 = pneg %p60
      $region14: #{movie_tower_forward.1} parent=11 // pred_check_branch
        %208 = sbr.rel (%p206) target = $region16
      $region15: #{movie_tower_forward.1} parent=11 // pred_region
        _
      $region16: #{movie_tower_forward.1} parent=11 // pred_fallthru
        _
      // Predicated region
      $region17: #{movie_tower_forward.1} parent=11 // pred_check
        %p209 = pneg %p81
      $region18: #{movie_tower_forward.1} parent=11 // pred_check_branch
        %211 = sbr.rel (%p209) target = $region20
      $region19: #{movie_tower_forward.1} parent=11 // pred_region
        _
      $region20: #{movie_tower_forward.1} parent=11 // pred_fallthru
        _
      // Predicated region
      $region21: #{movie_tower_forward.1} parent=11 // pred_check
        %p212 = pneg %p102
      $region22: #{movie_tower_forward.1} parent=11 // pred_check_branch
        %214 = sbr.rel (%p212) target = $region24
      $region23: #{movie_tower_forward.1} parent=11 // pred_region
        _
      $region24: #{movie_tower_forward.1} parent=11 // pred_fallthru
        _
      // Predicated region
      $region25: #{movie_tower_forward.1} parent=11 // pred_check
        %p215 = pneg %p123
      $region26: #{movie_tower_forward.1} parent=11 // pred_check_branch
        %217 = sbr.rel (%p215) target = $region28
      $region27: #{movie_tower_forward.1} parent=11 // pred_region
        _
      $region28: #{movie_tower_forward.1} parent=11 // pred_fallthru
        _
      // Predicated region
      $region29: #{movie_tower_forward.1} parent=11 // pred_check
        %p218 = pneg %p144
      $region30: #{movie_tower_forward.1} parent=11 // pred_check_branch
        %220 = sbr.rel (%p218) target = $region32
      $region31: #{movie_tower_forward.1} parent=11 // pred_region
        _
      $region32: #{movie_tower_forward.1} parent=11 // pred_fallthru
        _
      // Predicated region
      $region33: #{movie_tower_forward.1} parent=11 // pred_check
        %p221 = pneg %p165
      $region34: #{movie_tower_forward.1} parent=11 // pred_check_branch
        %223 = sbr.rel (%p221) target = $region36
      $region35: #{movie_tower_forward.1} parent=11 // pred_region
        _
      $region36: #{movie_tower_forward.1} parent=11 // pred_fallthru
        _
    $region12: #{movie_tower_forward.1} parent=5 // pred_fallthru
      _
    %p224 = scmp.lt.s32.totalorder %s13, 2
    // Predicated region
    $region37: #{movie_tower_forward.1} parent=5 // pred_check
      %p225 = pneg %p224
    $region38: #{movie_tower_forward.1} parent=5 // pred_check_branch
      %227 = sbr.rel (%p225) target = $region40
    $region39: #{movie_tower_forward.1} parent=5 // pred_region
      // Predicated region
      $region41: #{movie_tower_forward.1} parent=39 // pred_check
        %p228 = pneg %p33
      $region42: #{movie_tower_forward.1} parent=39 // pred_check_branch
        %230 = sbr.rel (%p228) target = $region44
      $region43: #{movie_tower_forward.1} parent=39 // pred_region
        %s231 = smul.u32 2, %s13
        %p232 = scmp.lt.s32.totalorder %s231, 3
        %s233 = scalar_select %p232, %s231, 3
        %s234 = smul.addr %s233, 4
        %s235 = scalar_lea.vmem %s0, %s234
        %s236 = smul.u32 2, %s13
      $region44: #{movie_tower_forward.1} parent=39 // pred_fallthru
        _
    $region40: #{movie_tower_forward.1} parent=5 // pred_fallthru
      _
    %p237 = scmp.le.s32.totalorder 1, %s13
    %p238 = scmp.lt.s32.totalorder %s13, 3
    %p239 = pnand %p237, %p238
    %p240 = pneg %p239
    // Predicated region
    $region45: #{movie_tower_forward.1} parent=5 // pred_check
      _
    $region46: #{movie_tower_forward.1} parent=5 // pred_check_branch
      %242 = sbr.rel (%p239) target = $region48
    $region47: #{movie_tower_forward.1} parent=5 // pred_region
      %s243 = ssub.s32 %s13, 1
      %s244 = smul.u32 2, %s18
      %p245 = scmp.lt.s32.totalorder %s244, 3
      %s246 = scalar_select %p245, %s244, 3
      %s247 = smul.addr %s246, 4
      %s248 = scalar_lea.vmem %s0, %s247
      %p249 = pneg %p39
      %p250 = pneg %p36
      %p251 = pneg %p60
      %p252 = pneg %p57
      %p253 = pneg %p81
      %p254 = pneg %p78
      %p255 = pneg %p102
      %p256 = pneg %p99
      %p257 = pneg %p123
      %p258 = pneg %p120
      %p259 = pneg %p144
      %p260 = pneg %p141
      %p261 = pneg %p165
      %p262 = pneg %p162
      %p263 = pneg %p191
      %p264 = pneg %p188
      %s265 = smul.u32 2, %s18
      %p266 = scmp.lt.s32.totalorder %s265, 3
      %s267 = scalar_select %p266, %s265, 3
      %s268 = smul.addr %s267, 8
      %s269 = scalar_lea.vmem %s7, %s268
      %s270 = smul.u32 2, %s18
      %p271 = scmp.lt.s32.totalorder %s270, 3
      %s272 = scalar_select %p271, %s270, 3
      %s273 = smul.addr %s272, 4
      %s274 = scalar_lea.vmem %s0, %s273
      %s275 = smul.u32 2, %s18
      %s276 = smul.u32 2, %s18
      %p277 = scmp.lt.s32.totalorder %s276, 3
      %s278 = scalar_select %p277, %s276, 3
      %s279 = smul.addr %s278, 8
      %s280 = scalar_lea.vmem %s7, %s279
      %s281 = smul.u32 2, %s18
      %v283 = vld [vmem:[%s274] sm:$0xf]
      %v284 = vld [vmem:[%s274 + $0x4] sm:$0xf]
      %v285 = vld [vmem:[%s1] sm:$0xf]
      %v286 = vld [vmem:[%s1 + $0x4] sm:$0xf]
      %v287 = vld [vmem:[%s1 + $0x8] sm:$0xf]
      %v288 = vld [vmem:[%s1 + $0xc] sm:$0xf]
      %v289 = vld [vmem:[%s1 + $0x10] sm:$0x1]
      %v290 = vld [vmem:[%s2] sm:$0x1]
      %v291 = vunpack.c.l.bf16 %v290
      %v292 = vlaneseq
      %v293 = vshrl.u32 %v292, 7
      %v294 = vsub.s32 0, %v293
      %v295 = vrot.slane %v291, %v294
      %v298 = vunpack.c.l.b16 %v283
      %v299 = vunpack.c.l.b16 %v284
      %v300 = vpack.c.b16 %v299, %v298
      %v306 = vunpack.c.l.b16 %v285
      %v307 = vunpack.c.l.b16 %v286
      %v308 = vunpack.c.l.b16 %v287
      %v309 = vunpack.c.l.b16 %v288
      %v310 = vunpack.c.l.b16 %v289
      %v311 = vpack.c.b16 %v307, %v306
      %v312 = vpack.c.b16 %v309, %v308
      %v313 = vpack.c.b16 %v310, %v310
      %vm316 = vcmask 269312
      %v318 = vsel %vm316, %v300, 0
      %vm320 = vcmask 1040384
      %v321 = vsel 0, 4294967295, 65535
      %v322 = vsel %vm320, %v321, 0
      %v324 = vand.u32 %v313, %v322
      %326 = vmatprep.subr.bf16.mxu0 0
      %327 = vmatpush1.bf16.msra.mxu0 0
      %328 = vmatprep.subr.bf16.mxu0 0
      %329 = vmatpush1.bf16.msra.mxu0 0
      %330 = vmatprep.subr.bf16.mxu0 0
      %331 = vmatpush1.bf16.msra.mxu0 0
      %332 = vmatprep.subr.bf16.mxu0 0
      %333 = vmatpush1.bf16.msra.mxu0 0
      %334 = vmatprep.subr.bf16.mxu0 0
      %335 = vmatpush1.bf16.msra.mxu0 0
      %336 = vmatprep.subr.bf16.mxu0 0
      %337 = vmatpush1.bf16.msra.mxu0 %v324
      %338 = vmatprep.subr.bf16.mxu0 0
      %339 = vmatpush1.bf16.msra.mxu0 %v312
      %340 = vmatprep.subr.bf16.mxu0 0
      %341 = vmatpush1.bf16.msra.mxu0 %v311
      %342 = vmatprep.subr.bf16.mxu0 0
      %343 = vmatpush2.bf16.msra.mxu0 0
      %344 = vmatprep.subr.bf16.mxu0 0
      %345 = vmatpush2.bf16.msra.mxu0 0
      %346 = vmatprep.subr.bf16.mxu0 0
      %347 = vmatpush2.bf16.msra.mxu0 0
      %348 = vmatprep.subr.bf16.mxu0 0
      %349 = vmatpush2.bf16.msra.mxu0 0
      %350 = vmatprep.subr.bf16.mxu0 0
      %351 = vmatpush2.bf16.msra.mxu0 0
      %352 = vmatprep.subr.bf16.mxu0 0
      %353 = vmatpush2.bf16.msra.mxu0 0
      %354 = vmatprep.subr.bf16.mxu0 0
      %355 = vmatpush2.bf16.msra.mxu0 0
      %356 = vmatprep.subr.bf16.mxu0 0
      %357 = vmatpush2.bf16.msra.mxu0 0
      %358 = vmatprep.mubr.bf16.mxu0 0
      %359 = vmatmul.mubr.bf16.gmra.mxu0 %v318
      %v360 = vpop.f32.mrf.mxu0
      %v361 = vadd.f32 %v295, %v360
      %v362 = vpop.f32.mrf.mxu0
      %v363 = vpop.f32.mrf.mxu0
      %v364 = vadd.f32 %v295, %v363
      %v365 = vpop.f32.mrf.mxu0
      %366 = vdwg.mxu0
      %v367 = vmax.f32 %v361, 0.0
      %v368 = vmax.f32 %v364, 0.0
      %v369 = vpack.c.bf16 %v368, %v367
      %v370 = vld [vmem:[%s3] sm:$0xf]
      %v371 = vld [vmem:[%s3 + $0x4] sm:$0xf]
      %v372 = vld [vmem:[%s3 + $0x8] sm:$0xf]
      %v373 = vld [vmem:[%s3 + $0xc] sm:$0xf]
      %v374 = vld [vmem:[%s3 + $0x10] sm:$0xf]
      %v375 = vld [vmem:[%s3 + $0x14] sm:$0xf]
      %v376 = vld [vmem:[%s3 + $0x18] sm:$0xf]
      %v377 = vld [vmem:[%s3 + $0x1c] sm:$0xf]
      %v378 = vld [vmem:[%s3 + $0x20] sm:$0xf]
      %v379 = vld [vmem:[%s3 + $0x24] sm:$0xf]
      %v380 = vld [vmem:[%s3 + $0x28] sm:$0xf]
      %v381 = vld [vmem:[%s3 + $0x2c] sm:$0xf]
      %v382 = vld [vmem:[%s3 + $0x30] sm:$0xf]
      %v383 = vld [vmem:[%s3 + $0x34] sm:$0xf]
      %v384 = vld [vmem:[%s3 + $0x38] sm:$0xf]
      %v385 = vld [vmem:[%s3 + $0x3c] sm:$0xf]
      %v386 = vld [vmem:[%s4] sm:$0x1]
      %v387 = vunpack.c.l.bf16 %v386
      %v388 = vlaneseq
      %v389 = vshrl.u32 %v388, 7
      %v390 = vsub.s32 0, %v389
      %v391 = vrot.slane %v387, %v390
      %v408 = vunpack.c.l.b16 %v370
      %v409 = vunpack.c.l.b16 %v371
      %v410 = vunpack.c.l.b16 %v372
      %v411 = vunpack.c.l.b16 %v373
      %v412 = vunpack.c.l.b16 %v374
      %v413 = vunpack.c.l.b16 %v375
      %v414 = vunpack.c.l.b16 %v376
      %v415 = vunpack.c.l.b16 %v377
      %v416 = vunpack.c.l.b16 %v378
      %v417 = vunpack.c.l.b16 %v379
      %v418 = vunpack.c.l.b16 %v380
      %v419 = vunpack.c.l.b16 %v381
      %v420 = vunpack.c.l.b16 %v382
      %v421 = vunpack.c.l.b16 %v383
      %v422 = vunpack.c.l.b16 %v384
      %v423 = vunpack.c.l.b16 %v385
      %v424 = vpack.c.b16 %v409, %v408
      %v425 = vpack.c.b16 %v411, %v410
      %v426 = vpack.c.b16 %v413, %v412
      %v427 = vpack.c.b16 %v415, %v414
      %v428 = vpack.c.b16 %v417, %v416
      %v429 = vpack.c.b16 %v419, %v418
      %v430 = vpack.c.b16 %v421, %v420
      %v431 = vpack.c.b16 %v423, %v422
      %440 = vmatprep.subr.bf16.mxu0 0
      %441 = vmatpush1.bf16.msra.mxu0 %v431
      %442 = vmatprep.subr.bf16.mxu0 0
      %443 = vmatpush1.bf16.msra.mxu0 %v430
      %444 = vmatprep.subr.bf16.mxu0 0
      %445 = vmatpush1.bf16.msra.mxu0 %v429
      %446 = vmatprep.subr.bf16.mxu0 0
      %447 = vmatpush1.bf16.msra.mxu0 %v428
      %448 = vmatprep.subr.bf16.mxu0 0
      %449 = vmatpush1.bf16.msra.mxu0 %v427
      %450 = vmatprep.subr.bf16.mxu0 0
      %451 = vmatpush1.bf16.msra.mxu0 %v426
      %452 = vmatprep.subr.bf16.mxu0 0
      %453 = vmatpush1.bf16.msra.mxu0 %v425
      %454 = vmatprep.subr.bf16.mxu0 0
      %455 = vmatpush1.bf16.msra.mxu0 %v424
      %456 = vmatprep.subr.bf16.mxu0 0
      %457 = vmatpush2.bf16.msra.mxu0 0
      %458 = vmatprep.subr.bf16.mxu0 0
      %459 = vmatpush2.bf16.msra.mxu0 0
      %460 = vmatprep.subr.bf16.mxu0 0
      %461 = vmatpush2.bf16.msra.mxu0 0
      %462 = vmatprep.subr.bf16.mxu0 0
      %463 = vmatpush2.bf16.msra.mxu0 0
      %464 = vmatprep.subr.bf16.mxu0 0
      %465 = vmatpush2.bf16.msra.mxu0 0
      %466 = vmatprep.subr.bf16.mxu0 0
      %467 = vmatpush2.bf16.msra.mxu0 0
      %468 = vmatprep.subr.bf16.mxu0 0
      %469 = vmatpush2.bf16.msra.mxu0 0
      %470 = vmatprep.subr.bf16.mxu0 0
      %471 = vmatpush2.bf16.msra.mxu0 0
      %472 = vmatprep.mubr.bf16.mxu0 0
      %473 = vmatmul.mubr.bf16.gmra.mxu0 %v369
      %v474 = vpop.f32.mrf.mxu0
      %v475 = vadd.f32 %v391, %v474
      %v476 = vpop.f32.mrf.mxu0
      %v477 = vpop.f32.mrf.mxu0
      %v478 = vadd.f32 %v391, %v477
      %v479 = vpop.f32.mrf.mxu0
      %480 = vdwg.mxu0
      %v481 = vmax.f32 %v475, 0.0
      %v482 = vmax.f32 %v478, 0.0
      %v483 = vpack.c.bf16 %v482, %v481
      %v484 = vld [vmem:[%s5] sm:$0xf]
      %v485 = vld [vmem:[%s5 + $0x4] sm:$0xf]
      %v486 = vld [vmem:[%s5 + $0x8] sm:$0xf]
      %v487 = vld [vmem:[%s5 + $0xc] sm:$0xf]
      %v488 = vld [vmem:[%s5 + $0x10] sm:$0xf]
      %v489 = vld [vmem:[%s5 + $0x14] sm:$0xf]
      %v490 = vld [vmem:[%s5 + $0x18] sm:$0xf]
      %v491 = vld [vmem:[%s5 + $0x1c] sm:$0xf]
      %v492 = vld [vmem:[%s5 + $0x20] sm:$0xf]
      %v493 = vld [vmem:[%s5 + $0x24] sm:$0xf]
      %v494 = vld [vmem:[%s5 + $0x28] sm:$0xf]
      %v495 = vld [vmem:[%s5 + $0x2c] sm:$0xf]
      %v496 = vld [vmem:[%s5 + $0x30] sm:$0xf]
      %v497 = vld [vmem:[%s5 + $0x34] sm:$0xf]
      %v498 = vld [vmem:[%s5 + $0x38] sm:$0xf]
      %v499 = vld [vmem:[%s5 + $0x3c] sm:$0xf]
      %v500 = vld [vmem:[%s6] sm:$0x1]
      %v501 = vunpack.c.l.bf16 %v500
      %v502 = vlaneseq
      %v503 = vshrl.u32 %v502, 7
      %v504 = vsub.s32 0, %v503
      %v505 = vrot.slane %v501, %v504
      %v522 = vunpack.c.l.b16 %v484
      %v523 = vunpack.c.l.b16 %v485
      %v524 = vunpack.c.l.b16 %v486
      %v525 = vunpack.c.l.b16 %v487
      %v526 = vunpack.c.l.b16 %v488
      %v527 = vunpack.c.l.b16 %v489
      %v528 = vunpack.c.l.b16 %v490
      %v529 = vunpack.c.l.b16 %v491
      %v530 = vunpack.c.l.b16 %v492
      %v531 = vunpack.c.l.b16 %v493
      %v532 = vunpack.c.l.b16 %v494
      %v533 = vunpack.c.l.b16 %v495
      %v534 = vunpack.c.l.b16 %v496
      %v535 = vunpack.c.l.b16 %v497
      %v536 = vunpack.c.l.b16 %v498
      %v537 = vunpack.c.l.b16 %v499
      %v538 = vpack.c.b16 %v523, %v522
      %v539 = vpack.c.b16 %v525, %v524
      %v540 = vpack.c.b16 %v527, %v526
      %v541 = vpack.c.b16 %v529, %v528
      %v542 = vpack.c.b16 %v531, %v530
      %v543 = vpack.c.b16 %v533, %v532
      %v544 = vpack.c.b16 %v535, %v534
      %v545 = vpack.c.b16 %v537, %v536
      %554 = vmatprep.subr.bf16.mxu0 0
      %555 = vmatpush1.bf16.msra.mxu0 %v545
      %556 = vmatprep.subr.bf16.mxu0 0
      %557 = vmatpush1.bf16.msra.mxu0 %v544
      %558 = vmatprep.subr.bf16.mxu0 0
      %559 = vmatpush1.bf16.msra.mxu0 %v543
      %560 = vmatprep.subr.bf16.mxu0 0
      %561 = vmatpush1.bf16.msra.mxu0 %v542
      %562 = vmatprep.subr.bf16.mxu0 0
      %563 = vmatpush1.bf16.msra.mxu0 %v541
      %564 = vmatprep.subr.bf16.mxu0 0
      %565 = vmatpush1.bf16.msra.mxu0 %v540
      %566 = vmatprep.subr.bf16.mxu0 0
      %567 = vmatpush1.bf16.msra.mxu0 %v539
      %568 = vmatprep.subr.bf16.mxu0 0
      %569 = vmatpush1.bf16.msra.mxu0 %v538
      %570 = vmatprep.subr.bf16.mxu0 0
      %571 = vmatpush2.bf16.msra.mxu0 0
      %572 = vmatprep.subr.bf16.mxu0 0
      %573 = vmatpush2.bf16.msra.mxu0 0
      %574 = vmatprep.subr.bf16.mxu0 0
      %575 = vmatpush2.bf16.msra.mxu0 0
      %576 = vmatprep.subr.bf16.mxu0 0
      %577 = vmatpush2.bf16.msra.mxu0 0
      %578 = vmatprep.subr.bf16.mxu0 0
      %579 = vmatpush2.bf16.msra.mxu0 0
      %580 = vmatprep.subr.bf16.mxu0 0
      %581 = vmatpush2.bf16.msra.mxu0 0
      %582 = vmatprep.subr.bf16.mxu0 0
      %583 = vmatpush2.bf16.msra.mxu0 0
      %584 = vmatprep.subr.bf16.mxu0 0
      %585 = vmatpush2.bf16.msra.mxu0 0
      %586 = vmatprep.mubr.bf16.mxu0 0
      %587 = vmatmul.mubr.bf16.gmra.mxu0 %v483
      %v588 = vpop.f32.mrf.mxu0
      %v589 = vadd.f32 %v505, %v588
      %v590 = vpop.f32.mrf.mxu0
      %v591 = vpop.f32.mrf.mxu0
      %v592 = vadd.f32 %v505, %v591
      %v593 = vpop.f32.mrf.mxu0
      %594 = vdwg.mxu0
      %v595 = vmax.f32 %v589, 0.0
      %v596 = vmax.f32 %v592, 0.0
      %vm597 = vcmask 523264
      %598 = vst.msk [vmem:[%s280] sm:$0xff] %vm597, %v595
      %599 = vst.msk [vmem:[%s280 + $0x8] sm:$0xff] %vm597, %v596
      %s600 = smul.u32 2, %s18
      %p601 = scmp.lt.s32.totalorder %s600, 3
      %s602 = scalar_select %p601, %s600, 3
      %s603 = smul.addr %s602, 8
      %s604 = scalar_lea.vmem %s7, %s603
      // Predicated region
      $region49: #{movie_tower_forward.1} parent=47 // pred_check
        %p605 = pneg %p188
      $region50: #{movie_tower_forward.1} parent=47 // pred_check_branch
        %607 = sbr.rel (%p605) target = $region52
      $region51: #{movie_tower_forward.1} parent=47 // pred_region
        %s608 = smul.u32 2, %s18
      $region52: #{movie_tower_forward.1} parent=47 // pred_fallthru
        _
    $region48: #{movie_tower_forward.1} parent=5 // pred_fallthru
      _
    %p609 = scmp.le.s32.totalorder 2, %s13
    // Predicated region
    $region53: #{movie_tower_forward.1} parent=5 // pred_check
      %p610 = pneg %p609
    $region54: #{movie_tower_forward.1} parent=5 // pred_check_branch
      %612 = sbr.rel (%p610) target = $region56
    $region55: #{movie_tower_forward.1} parent=5 // pred_region
      %s613 = ssub.s32 %s13, 2
      // Predicated region
      $region57: #{movie_tower_forward.1} parent=55 // pred_check
        %p614 = pneg %p194
      $region58: #{movie_tower_forward.1} parent=55 // pred_check_branch
        %616 = sbr.rel (%p614) target = $region60
      $region59: #{movie_tower_forward.1} parent=55 // pred_region
        %s617 = smul.u32 2, %s19
        %p618 = scmp.lt.s32.totalorder %s617, 3
        %s619 = scalar_select %p618, %s617, 3
        %s620 = smul.addr %s619, 8
        %s621 = scalar_lea.vmem %s7, %s620
      $region60: #{movie_tower_forward.1} parent=55 // pred_fallthru
        _
    $region56: #{movie_tower_forward.1} parent=5 // pred_fallthru
      _
  $region6: #{movie_tower_forward.1} parent=0 // loop_footer
    %s17 = sadd.s32 1, %s13
  $region7: #{movie_tower_forward.1} parent=0 // loop_footer_branch
    %12 = sbr.rel target = $region3
  $region8: #{movie_tower_forward.1} parent=0 // loop_exit
    _

</llo_original>
